<compile_context>
chip_gen: v5e
topology: v5e:2x2
jax: 0.10.0
libtpu: 0.0.40
codegen_flags: <defaults>
</compile_context>

<pallas_src>
import functools
import math

import jax
import jax.numpy as jnp
from jax.experimental import pallas as pl
from jax.experimental.pallas import tpu as pltpu


def _round_up(x, m):
    return ((x + m - 1) // m) * m


def _pad2d(x, rows, cols):
    pr, pc = rows - x.shape[0], cols - x.shape[1]
    if pr or pc:
        x = jnp.pad(x, ((0, pr), (0, pc)))
    return x


# ---------------------------------------------------------------------------
# Kernels
# ---------------------------------------------------------------------------
def _lgm_scl_kernel(mxu_dtype, feat_i_ref, feat_j_ref, means_ref, yy_ref,
                    nsd_ref, featn_ref, gram_ref):
    """scl=True: normalized feat, neg_sqr_dist, and Gram matrix tiles."""
    j = pl.program_id(1)

    @pl.when(j == 0)
    def _():
        feat_i = feat_i_ref[...].astype(jnp.float32)
        # Single row reduction per tile; rsqrt goes to the EUP slot.
        ssq = jnp.sum(feat_i * feat_i, axis=1, keepdims=True)
        inv = jax.lax.rsqrt(jnp.maximum(ssq, 1e-24))  # == 1 / max(||x||, 1e-12)
        featn_i = feat_i * inv
        featn_ref[...] = featn_i

        # XY = featn @ means.T on the MXU (bf16 operands, f32 accumulation).
        xy = jax.lax.dot_general(
            featn_i.astype(mxu_dtype), means_ref[...],
            (((1,), (1,)), ((), ())), preferred_element_type=jnp.float32)
        # ||featn||^2 without a second reduction: ssq * inv^2 (1 for real rows,
        # 0 for all-zero padding rows).
        xx = ssq * (inv * inv)
        nsd_ref[...] = -0.5 * (xx - 2.0 * xy + yy_ref[...])

    # Gram tile (i, j) = featn_i @ featn_j.T.  featn_i is read back from the
    # resident output block (written at j == 0); only the j tile is normalized
    # here (cheap vs. the tb x tb x D MXU work).
    feat_j = feat_j_ref[...].astype(jnp.float32)
    ssq_j = jnp.sum(feat_j * feat_j, axis=1, keepdims=True)
    featn_j = feat_j * jax.lax.rsqrt(jnp.maximum(ssq_j, 1e-24))
    gram_ref[...] = jax.lax.dot_general(
        featn_ref[...].astype(mxu_dtype), featn_j.astype(mxu_dtype),
        (((1,), (1,)), ((), ())), preferred_element_type=jnp.float32)


def _lgm_noscl_kernel(mxu_dtype, feat_ref, means_ref, yy_ref, nsd_ref):
    """scl=False: only neg_sqr_dist is needed downstream."""
    feat = feat_ref[...].astype(jnp.float32)
    xx = jnp.sum(feat * feat, axis=1, keepdims=True)
    xy = jax.lax.dot_general(
        feat.astype(mxu_dtype), means_ref[...],
        (((1,), (1,)), ((), ())), preferred_element_type=jnp.float32)
    nsd_ref[...] = -0.5 * (xx - 2.0 * xy + yy_ref[...])


# ---------------------------------------------------------------------------
# Pallas wrapper
# ---------------------------------------------------------------------------
def _lgm_pallas(feat, means, *, scl, tile_b=512, mxu_dtype=jnp.bfloat16):
    """Returns (neg_sqr_dist, featn, gram); featn/gram are None when scl=False."""
    B, D = feat.shape
    C = means.shape[0]

    # Lane-dense, MXU-friendly padding: everything 128-aligned; the row tile is
    # up to 512 (a 256-multiple, so it also fills v6e/v7x's 256x256 MXU).
    b128 = _round_up(B, 128)
    tb = min(tile_b, b128)
    if b128 % tb:
        tb = math.gcd(b128 // 128, tb // 128) * 128  # minimize batch padding
    b_pad = _round_up(B, tb)
    d_pad = _round_up(D, 128)
    c_pad = _round_up(C, 128)
    gi = b_pad // tb

    feat_p = _pad2d(feat.astype(jnp.float32), b_pad, d_pad)
    means_f32 = _pad2d(means.astype(jnp.float32), c_pad, d_pad)
    means_p = means_f32.astype(mxu_dtype)               # bf16 to the MXU
    # Hoisted class-norm term: computed once here, not once per batch tile.
    yy = jnp.sum(means_f32 * means_f32, axis=1)[None, :]  # (1, C_pad), f32

    f32 = 4
    if scl:
        tile_bytes = (f32 * (2 * tb * d_pad + c_pad + tb * c_pad
                             + tb * d_pad + tb * tb)
                      + jnp.dtype(mxu_dtype).itemsize * c_pad * d_pad)
        vmem_limit = int(min(64 << 20, max(32 << 20, 2 * tile_bytes + (8 << 20))))
        flops = 2 * b_pad * d_pad * (c_pad + b_pad)
        bytes_accessed = f32 * ((gi + 1) * b_pad * d_pad + c_pad * d_pad
                                + b_pad * c_pad + b_pad * d_pad + b_pad * b_pad)

        nsd_p, featn_p, gram_p = pl.pallas_call(
            functools.partial(_lgm_scl_kernel, mxu_dtype),
            grid=(gi, gi),
            in_specs=[
                pl.BlockSpec((tb, d_pad), lambda i, j: (i, 0)),      # feat_i
                pl.BlockSpec((tb, d_pad), lambda i, j: (j, 0)),      # feat_j
                pl.BlockSpec((c_pad, d_pad), lambda i, j: (0, 0)),   # means (resident)
                pl.BlockSpec((1, c_pad), lambda i, j: (0, 0)),       # YY (resident)
            ],
            out_specs=[
                pl.BlockSpec((tb, c_pad), lambda i, j: (i, 0)),      # neg_sqr_dist
                pl.BlockSpec((tb, d_pad), lambda i, j: (i, 0)),      # featn
                pl.BlockSpec((tb, tb), lambda i, j: (i, j)),         # gram
            ],
            out_shape=[
                jax.ShapeDtypeStruct((b_pad, c_pad), jnp.float32),
                jax.ShapeDtypeStruct((b_pad, d_pad), jnp.float32),
                jax.ShapeDtypeStruct((b_pad, b_pad), jnp.float32),
            ],
            compiler_params=pltpu.CompilerParams(
                dimension_semantics=("parallel", "arbitrary"),
                vmem_limit_bytes=vmem_limit),
            cost_estimate=pl.CostEstimate(
                flops=flops, transcendentals=2 * b_pad,
                bytes_accessed=bytes_accessed),
        )(feat_p, feat_p, means_p, yy)
        return nsd_p[:B, :C], featn_p[:B, :D], gram_p[:B, :B]

    # scl == False path: only neg_sqr_dist.
    tile_bytes = (f32 * (tb * d_pad + c_pad + tb * c_pad)
                  + jnp.dtype(mxu_dtype).itemsize * c_pad * d_pad)
    vmem_limit = int(min(64 << 20, max(32 << 20, 2 * tile_bytes + (8 << 20))))
    nsd_p = pl.pallas_call(
        functools.partial(_lgm_noscl_kernel, mxu_dtype),
        grid=(gi,),
        in_specs=[
            pl.BlockSpec((tb, d_pad), lambda i: (i, 0)),
            pl.BlockSpec((c_pad, d_pad), lambda i: (0, 0)),
            pl.BlockSpec((1, c_pad), lambda i: (0, 0)),
        ],
        out_specs=pl.BlockSpec((tb, c_pad), lambda i: (i, 0)),
        out_shape=jax.ShapeDtypeStruct((b_pad, c_pad), jnp.float32),
        compiler_params=pltpu.CompilerParams(
            dimension_semantics=("parallel",),
            vmem_limit_bytes=vmem_limit),
        cost_estimate=pl.CostEstimate(
            flops=2 * b_pad * d_pad * c_pad, transcendentals=0,
            bytes_accessed=f32 * (b_pad * d_pad + c_pad * d_pad + b_pad * c_pad)),
    )(feat_p, means_p, yy)
    return nsd_p[:B, :C], None, None


# ---------------------------------------------------------------------------
# Loss assembly (plain JAX glue) — shared by the kernel path and the reference.
# ---------------------------------------------------------------------------
def _assemble_loss(nsd, featn, gram, feat, means, labels, *,
                   alpha, lambda_, scl, t_scale, lam2):
    B, C = nsd.shape
    one_hot = jax.nn.one_hot(labels, C, dtype=jnp.float32)
    # ALPHA.scatter_(1, labels, alpha) + ones  ==  1 + alpha * one_hot
    logits_with_margin = nsd * (1.0 + alpha * one_hot)
    log_probs = jax.nn.log_softmax(logits_with_margin, axis=1)
    ce = -jnp.mean(jnp.sum(one_hot * log_probs, axis=1))   # nn.CrossEntropyLoss

    if scl:
        m_norm = jnp.sqrt(jnp.sum(means * means, axis=1, keepdims=True))
        means_n = means / jnp.maximum(m_norm, 1e-12)       # F.normalize(means)
        f = featn
    else:
        means_n = means
        f = feat
    means_batch = means_n[labels]                          # index_select
    loss_margin = jnp.sum((f - means_batch) ** 2) / 2.0 * (1.0 / B)

    if not scl:
        return ce + lambda_ * loss_margin

    # Supervised-contrastive loss (vectorized SCLoss) from the Gram matrix.
    G = gram / t_scale
    eye = jnp.eye(B, dtype=bool)
    bottom = jnp.sum(jnp.where(eye, 0.0, jnp.exp(G)), axis=1, keepdims=True)
    same = (labels[:, None] == labels[None, :]) & (~eye)
    per_pair = jnp.where(same, G - jnp.log(bottom), 0.0)
    n_pos = jnp.sum(same, axis=1).astype(jnp.float32)
    sum_log = jnp.sum(per_pair, axis=1)
    valid = n_pos > 0
    per_i = jnp.where(valid, -sum_log / jnp.maximum(n_pos, 1.0), 0.0)
    n_valid = jnp.sum(valid).astype(jnp.float32)
    scl_loss = jnp.where(n_valid > 0,
                         jnp.sum(per_i) / jnp.maximum(n_valid, 1.0), 0.0)
    return (1.0 - lam2) * ce + lam2 * scl_loss + lambda_ * loss_margin


def lgm_forward(feat, means, labels=None, *, alpha=0.5, lambda_=0.5, scl=True,
                t_scale=0.3, lam2=0.1, tile_b=512, mxu_dtype=jnp.bfloat16):
    """Matches LGMLoss.forward: returns (neg_sqr_dist, loss)."""
    nsd, featn, gram = _lgm_pallas(feat, means, scl=scl, tile_b=tile_b,
                                   mxu_dtype=mxu_dtype)
    if labels is None:
        return nsd, jnp.float32(0.0)
    loss = _assemble_loss(nsd, featn, gram, feat, means, labels,
                          alpha=alpha, lambda_=lambda_, scl=scl,
                          t_scale=t_scale, lam2=lam2)
    return nsd, loss


def lgm_reference(feat, means, labels=None, *, alpha=0.5, lambda_=0.5,
                  scl=True, t_scale=0.3, lam2=0.1):
    """Pure-JAX f32 reference mirroring the PyTorch module."""
    if scl:
        n = jnp.sqrt(jnp.sum(feat * feat, axis=1, keepdims=True))
        featn = feat / jnp.maximum(n, 1e-12)
    else:
        featn = feat
    XY = featn @ means.T
    XX = jnp.sum(featn * featn, axis=1, keepdims=True)
    YY = jnp.sum(means * means, axis=1)[None, :]
    nsd = -0.5 * (XX - 2.0 * XY + YY)
    if labels is None:
        return nsd, jnp.float32(0.0)
    gram = featn @ featn.T if scl else None
    loss = _assemble_loss(nsd, featn if scl else None, gram, feat, means,
                          labels, alpha=alpha, lambda_=lambda_, scl=scl,
                          t_scale=t_scale, lam2=lam2)
    return nsd, loss


if __name__ == "__main__":
    # Small deterministic setup consistent with LGMLoss(num_classes, feat_dim).
    B, D, C = 8, 32, 4
    key = jax.random.PRNGKey(0)
    k_feat, k_lab, k_means = jax.random.split(key, 3)

    feat = jax.random.normal(k_feat, (B, D), dtype=jnp.float32)
    labels = jax.random.randint(k_lab, (B,), 0, C)

    # nn.init.xavier_uniform_(means, gain=sqrt(2.0)).
    gain = math.sqrt(2.0)
    bound = gain * math.sqrt(6.0 / (D + C))
    means = jax.random.uniform(k_means, (C, D), jnp.float32, -bound, bound)

    nsd, loss = lgm_forward(feat, means, labels, alpha=0.5, lambda_=0.5,
                            scl=True, t_scale=0.3, lam2=0.1)
    nsd_ns, loss_ns = lgm_forward(feat, means, labels, alpha=0.5, lambda_=0.5,
                                  scl=False, t_scale=0.3, lam2=0.1)
    jax.block_until_ready((nsd, loss, nsd_ns, loss_ns))

    assert nsd.shape == (B, C) and nsd_ns.shape == (B, C)
    assert bool(jnp.isfinite(loss)) and bool(jnp.isfinite(loss_ns))

    # Loose check against the pure-JAX f32 reference (kernel matmuls run bf16).
    nsd_ref, loss_ref = lgm_reference(feat, means, labels, scl=True)
    nsd_ref_ns, loss_ref_ns = lgm_reference(feat, means, labels, scl=False)
    assert jnp.allclose(nsd, nsd_ref, atol=5e-2, rtol=5e-2)
    assert jnp.allclose(loss, loss_ref, atol=5e-2, rtol=5e-2)
    assert jnp.allclose(nsd_ns, nsd_ref_ns, atol=5e-2, rtol=5e-2)
    assert jnp.allclose(loss_ns, loss_ref_ns, atol=5e-2, rtol=5e-2)

    print("KERNEL_OK")
</pallas_src>

<mosaic_0001>
module attributes {stable_mosaic.version = 11 : i64} {
  func.func @_lgm_scl_kernel(%arg0: i32, %arg1: i32, %arg2: memref<128x128xf32, #tpu.memory_space<vmem>>, %arg3: memref<128x128xf32, #tpu.memory_space<vmem>>, %arg4: memref<128x128xbf16, #tpu.memory_space<vmem>>, %arg5: memref<1x128xf32, #tpu.memory_space<vmem>>, %arg6: memref<128x128xf32, #tpu.memory_space<vmem>>, %arg7: memref<128x128xf32, #tpu.memory_space<vmem>>, %arg8: memref<128x128xf32, #tpu.memory_space<vmem>>) attributes {dimension_semantics = [#tpu.dimension_semantics<parallel>, #tpu.dimension_semantics<arbitrary>], iteration_bounds = array<i64: 1, 1>, scalar_prefetch = 0 : i64, scratch_operands = 0 : i64, tpu.core_type = #tpu.core_type<tc>, window_params = [{transform_indices = @transform_0, window_bounds = array<i64: 128, 128>}, {transform_indices = @transform_1, window_bounds = array<i64: 128, 128>}, {pipeline_mode = #tpu.pipeline_mode<synchronous>, transform_indices = @transform_2, window_bounds = array<i64: 128, 128>}, {pipeline_mode = #tpu.pipeline_mode<synchronous>, transform_indices = @transform_3, window_bounds = array<i64: 1, 128>}, {transform_indices = @transform_4, window_bounds = array<i64: 128, 128>}, {transform_indices = @transform_5, window_bounds = array<i64: 128, 128>}, {transform_indices = @transform_6, window_bounds = array<i64: 128, 128>}]} {
    %c0_i32 = arith.constant 0 : i32
    %0 = arith.cmpi eq, %arg1, %c0_i32 : i32
    %1 = arith.extui %0 : i1 to i32
    %c0_i32_0 = arith.constant 0 : i32
    %2 = arith.cmpi ne, %1, %c0_i32_0 : i32
    scf.if %2 {
      %c0_8 = arith.constant 0 : index
      %c0_9 = arith.constant 0 : index
      %17 = vector.load %arg2[%c0_8, %c0_9] : memref<128x128xf32, #tpu.memory_space<vmem>>, vector<128x128xf32>
      %18 = arith.mulf %17, %17 : vector<128x128xf32>
      %cst_10 = arith.constant dense<0.000000e+00> : vector<128xf32>
      %19 = vector.multi_reduction <add>, %18, %cst_10 [1] : vector<128x128xf32> to vector<128xf32>
      %20 = vector.shape_cast %19 : vector<128xf32> to vector<128x1xf32>
      %cst_11 = arith.constant 1.000000e-24 : f32
      %21 = vector.broadcast %cst_11 : f32 to vector<128x1xf32>
      %22 = arith.maximumf %20, %21 : vector<128x1xf32>
      %23 = math.rsqrt %22 : vector<128x1xf32>
      %24 = vector.broadcast %23 : vector<128x1xf32> to vector<128x128xf32>
      %25 = arith.mulf %17, %24 : vector<128x128xf32>
      %c0_12 = arith.constant 0 : index
      %c0_13 = arith.constant 0 : index
      %26 = vector.load %arg7[%c0_12, %c0_13] : memref<128x128xf32, #tpu.memory_space<vmem>>, vector<128x128xf32>
      tpu.vector_store %arg7[%c0_12, %c0_13], %25 {strides = array<i32>} : memref<128x128xf32, #tpu.memory_space<vmem>>, vector<128x128xf32>,
      %27 = arith.truncf %25 : vector<128x128xf32> to vector<128x128xbf16>
      %c0_14 = arith.constant 0 : index
      %c0_15 = arith.constant 0 : index
      %28 = vector.load %arg4[%c0_14, %c0_15] : memref<128x128xbf16, #tpu.memory_space<vmem>>, vector<128x128xbf16>
      %cst_16 = arith.constant dense<0.000000e+00> : vector<128x128xf32>
      %29 = tpu.matmul %27, %28, %cst_16 {dimension_numbers = #tpu.dot_dimension_numbers<[1], [1], [0], [0], [0, 0, 1, 0], [], []>} : vector<128x128xbf16>, vector<128x128xbf16>, vector<128x128xf32> -> vector<128x128xf32>
      %30 = arith.mulf %23, %23 : vector<128x1xf32>
      %31 = arith.mulf %20, %30 : vector<128x1xf32>
      %cst_17 = arith.constant 2.000000e+00 : f32
      %32 = vector.broadcast %cst_17 : f32 to vector<128x128xf32>
      %33 = arith.mulf %32, %29 : vector<128x128xf32>
      %34 = vector.broadcast %31 : vector<128x1xf32> to vector<128x128xf32>
      %35 = arith.subf %34, %33 : vector<128x128xf32>
      %c0_18 = arith.constant 0 : index
      %c0_19 = arith.constant 0 : index
      %36 = vector.load %arg5[%c0_18, %c0_19] : memref<1x128xf32, #tpu.memory_space<vmem>>, vector<1x128xf32>
      %37 = vector.broadcast %36 : vector<1x128xf32> to vector<128x128xf32>
      %38 = arith.addf %35, %37 : vector<128x128xf32>
      %cst_20 = arith.constant -5.000000e-01 : f32
      %39 = vector.broadcast %cst_20 : f32 to vector<128x128xf32>
      %40 = arith.mulf %39, %38 : vector<128x128xf32>
      %c0_21 = arith.constant 0 : index
      %c0_22 = arith.constant 0 : index
      %41 = vector.load %arg6[%c0_21, %c0_22] : memref<128x128xf32, #tpu.memory_space<vmem>>, vector<128x128xf32>
      tpu.vector_store %arg6[%c0_21, %c0_22], %40 {strides = array<i32>} : memref<128x128xf32, #tpu.memory_space<vmem>>, vector<128x128xf32>,
    } else {
    }
    %c0 = arith.constant 0 : index
    %c0_1 = arith.constant 0 : index
    %3 = vector.load %arg3[%c0, %c0_1] : memref<128x128xf32, #tpu.memory_space<vmem>>, vector<128x128xf32>
    %4 = arith.mulf %3, %3 : vector<128x128xf32>
    %cst = arith.constant dense<0.000000e+00> : vector<128xf32>
    %5 = vector.multi_reduction <add>, %4, %cst [1] : vector<128x128xf32> to vector<128xf32>
    %6 = vector.shape_cast %5 : vector<128xf32> to vector<128x1xf32>
    %cst_2 = arith.constant 1.000000e-24 : f32
    %7 = vector.broadcast %cst_2 : f32 to vector<128x1xf32>
    %8 = arith.maximumf %6, %7 : vector<128x1xf32>
    %9 = math.rsqrt %8 : vector<128x1xf32>
    %10 = vector.broadcast %9 : vector<128x1xf32> to vector<128x128xf32>
    %11 = arith.mulf %3, %10 : vector<128x128xf32>
    %c0_3 = arith.constant 0 : index
    %c0_4 = arith.constant 0 : index
    %12 = vector.load %arg7[%c0_3, %c0_4] : memref<128x128xf32, #tpu.memory_space<vmem>>, vector<128x128xf32>
    %13 = arith.truncf %12 : vector<128x128xf32> to vector<128x128xbf16>
    %14 = arith.truncf %11 : vector<128x128xf32> to vector<128x128xbf16>
    %cst_5 = arith.constant dense<0.000000e+00> : vector<128x128xf32>
    %15 = tpu.matmul %13, %14, %cst_5 {dimension_numbers = #tpu.dot_dimension_numbers<[1], [1], [0], [0], [0, 0, 1, 0], [], []>} : vector<128x128xbf16>, vector<128x128xbf16>, vector<128x128xf32> -> vector<128x128xf32>
    %c0_6 = arith.constant 0 : index
    %c0_7 = arith.constant 0 : index
    %16 = vector.load %arg8[%c0_6, %c0_7] : memref<128x128xf32, #tpu.memory_space<vmem>>, vector<128x128xf32>
    tpu.vector_store %arg8[%c0_6, %c0_7], %15 {strides = array<i32>} : memref<128x128xf32, #tpu.memory_space<vmem>>, vector<128x128xf32>,
    return
  }
  func.func @transform_0(%arg0: i32, %arg1: i32) -> (i32, i32) {
    %c0_i32 = arith.constant 0 : i32
    %c0_i32_0 = arith.constant 0 : i32
    return %arg0, %c0_i32 : i32, i32
  }
  func.func @transform_1(%arg0: i32, %arg1: i32) -> (i32, i32) {
    %c0_i32 = arith.constant 0 : i32
    %c0_i32_0 = arith.constant 0 : i32
    return %arg1, %c0_i32 : i32, i32
  }
  func.func @transform_2(%arg0: i32, %arg1: i32) -> (i32, i32) {
    %c0_i32 = arith.constant 0 : i32
    %c0_i32_0 = arith.constant 0 : i32
    %c0_i32_1 = arith.constant 0 : i32
    return %c0_i32, %c0_i32_0 : i32, i32
  }
  func.func @transform_3(%arg0: i32, %arg1: i32) -> (i32, i32) {
    %c0_i32 = arith.constant 0 : i32
    %c0_i32_0 = arith.constant 0 : i32
    %c0_i32_1 = arith.constant 0 : i32
    return %c0_i32, %c0_i32_0 : i32, i32
  }
  func.func @transform_4(%arg0: i32, %arg1: i32) -> (i32, i32) {
    %c0_i32 = arith.constant 0 : i32
    %c0_i32_0 = arith.constant 0 : i32
    return %arg0, %c0_i32 : i32, i32
  }
  func.func @transform_5(%arg0: i32, %arg1: i32) -> (i32, i32) {
    %c0_i32 = arith.constant 0 : i32
    %c0_i32_0 = arith.constant 0 : i32
    return %arg0, %c0_i32 : i32, i32
  }
  func.func @transform_6(%arg0: i32, %arg1: i32) -> (i32, i32) {
    %c0_i32 = arith.constant 0 : i32
    return %arg0, %arg1 : i32, i32
  }
}

</mosaic_0001>

<llo_original>
// kernel: tpu_custom_call.1
$region0: #{tpu_custom_call.1}
  #allocation0 [shape = 'u32[]', space=smem, size = 0x4, offset = 0x4, fixed_abs, tag = 'smem constant byte address 0x4 - core index']
  #allocation1 [shape = 'u32[72,128]{1,0:T(1,128)}', space=vmem, size = 0x9000, scoped, tag = 'internal scratch']
  %s0 = inlined_call_operand.hbm [shape: f32[128,128], index: 0, kind: input, shape index: {}]
  %s1 = inlined_call_operand.hbm [shape: f32[128,128], index: 1, kind: input, shape index: {}]
  %s2 = inlined_call_operand.hbm [shape: bf16[128,128], index: 2, kind: input, shape index: {}]
  %s3 = inlined_call_operand.vmem [shape: f32[1,128], index: 3, kind: input, shape index: {}]
  %s4 = inlined_call_operand.hbm [shape: f32[128,128], index: 4, kind: output, shape index: {0}]
  %s5 = inlined_call_operand.hbm [shape: f32[128,128], index: 5, kind: output, shape index: {1}]
  %s6 = inlined_call_operand.hbm [shape: f32[128,128], index: 6, kind: output, shape index: {2}]
  %7 = xla_tuple %s4, %s5, %s6
  %s8 = sld [smem:[#allocation0]]
  $region58: #{tpu_custom_call.1} parent=0
    _
  %s10 = ssub.s32 1, %s8
  %s11 = scalar_select 0, %s10, %s8
  $region1: #{tpu_custom_call.1} parent=0
    #allocation2 [shape = 'u8[65536]{0}', space=vmem, size = 0x10000, scoped, tag = 'input window, operand 0, single buffered']
    #allocation3 [shape = 's32[1]{0}', space=sflag, size = 0x4, scoped, tag = 'scoped memory for tpu_custom_call.1']
    #allocation4 [shape = 's32[1]{0}', space=sflag, size = 0x4, scoped, tag = 'scoped memory for tpu_custom_call.1']
    #allocation5 [shape = 'u8[65536]{0}', space=vmem, size = 0x10000, scoped, tag = 'input window, operand 1, single buffered']
    #allocation6 [shape = 's32[1]{0}', space=sflag, size = 0x4, scoped, tag = 'scoped memory for tpu_custom_call.1']
    #allocation7 [shape = 'u8[32768]{0}', space=vmem, size = 0x8000, scoped, tag = 'input window, operand 2, single buffered']
    #allocation8 [shape = 'u8[65536]{0}', space=vmem, size = 0x10000, scoped, tag = 'output window, operand 0, single buffered']
    #allocation9 [shape = 'u8[65536]{0}', space=vmem, size = 0x10000, scoped, tag = 'output window, operand 1, single buffered']
    #allocation10 [shape = 's32[1]{0}', space=sflag, size = 0x4, scoped, tag = 'scoped memory for tpu_custom_call.1']
    #allocation11 [shape = 'u8[65536]{0}', space=vmem, size = 0x10000, scoped, tag = 'output window, operand 2, single buffered']
    %12 = vsyncpa [#allocation3], 0
    %13 = vsyncpa [#allocation6], 0
    %14 = vsyncpa [#allocation4], 0
    %15 = vsyncpa [#allocation10], 0
    // Predicated region
    $region2: #{tpu_custom_call.1} parent=1 // pred_check
      _
    $region3: #{tpu_custom_call.1} parent=1 // pred_check_branch
      %17 = sbr.rel (0) target = $region5
    $region4: #{tpu_custom_call.1} parent=1 // pred_region
      %19 = vsyncadd [#allocation3], 0
      %s20 = sshll.u32 %s0, 4
      %s21 = int_to_ptr.hbm [resolvable:$true] %s20
      %s22 = sshll.u32 [#allocation2], 4
      %s23 = int_to_ptr.vmem [resolvable:$true] %s22
      %28 = dma.hbm_to_vmem [thread:$0]  %s21, 2048, %s23, [#allocation3], 128, 128, 8
    $region5: #{tpu_custom_call.1} parent=1 // pred_fallthru
      _
    // Predicated region
    $region6: #{tpu_custom_call.1} parent=1 // pred_check
      _
    $region7: #{tpu_custom_call.1} parent=1 // pred_check_branch
      %30 = sbr.rel (0) target = $region9
    $region8: #{tpu_custom_call.1} parent=1 // pred_region
      %32 = vsyncadd [#allocation6], 0
      %s33 = sshll.u32 %s1, 4
      %s34 = int_to_ptr.hbm [resolvable:$true] %s33
      %s35 = sshll.u32 [#allocation5], 4
      %s36 = int_to_ptr.vmem [resolvable:$true] %s35
      %41 = dma.hbm_to_vmem [thread:$0]  %s34, 2048, %s36, [#allocation6], 128, 128, 8
    $region9: #{tpu_custom_call.1} parent=1 // pred_fallthru
      _
    // Predicated region
    $region10: #{tpu_custom_call.1} parent=1 // pred_check
      _
    $region11: #{tpu_custom_call.1} parent=1 // pred_check_branch
      %43 = sbr.rel (0) target = $region13
    $region12: #{tpu_custom_call.1} parent=1 // pred_region
      %45 = vsyncadd [#allocation6], 0
      %s46 = sshll.u32 %s2, 4
      %s47 = int_to_ptr.hbm [resolvable:$true] %s46
      %s48 = sshll.u32 [#allocation7], 4
      %s49 = int_to_ptr.vmem [resolvable:$true] %s48
      %54 = dma.hbm_to_vmem [thread:$0]  %s47, 1024, %s49, [#allocation6], 64, 64, 4
    $region13: #{tpu_custom_call.1} parent=1 // pred_fallthru
      _
    // Predicated region
    $region14: #{tpu_custom_call.1} parent=1 // pred_check
      _
    $region15: #{tpu_custom_call.1} parent=1 // pred_check_branch
      %56 = sbr.rel (0) target = $region17
    $region16: #{tpu_custom_call.1} parent=1 // pred_region
      _
    $region17: #{tpu_custom_call.1} parent=1 // pred_fallthru
      _
    // Predicated region
    $region18: #{tpu_custom_call.1} parent=1 // pred_check
      _
    $region19: #{tpu_custom_call.1} parent=1 // pred_check_branch
      %58 = sbr.rel (0) target = $region21
    $region20: #{tpu_custom_call.1} parent=1 // pred_region
      %60 = dma.done [#allocation3], 2048
    $region21: #{tpu_custom_call.1} parent=1 // pred_fallthru
      _
    // Predicated region
    $region22: #{tpu_custom_call.1} parent=1 // pred_check
      _
    $region23: #{tpu_custom_call.1} parent=1 // pred_check_branch
      %62 = sbr.rel (0) target = $region25
    $region24: #{tpu_custom_call.1} parent=1 // pred_region
      %64 = dma.done [#allocation6], 2048
    $region25: #{tpu_custom_call.1} parent=1 // pred_fallthru
      _
    // Predicated region
    $region26: #{tpu_custom_call.1} parent=1 // pred_check
      _
    $region27: #{tpu_custom_call.1} parent=1 // pred_check_branch
      %66 = sbr.rel (0) target = $region29
    $region28: #{tpu_custom_call.1} parent=1 // pred_region
      %68 = dma.done [#allocation6], 1024
    $region29: #{tpu_custom_call.1} parent=1 // pred_fallthru
      _
    %p69 = scmp.eq.s32.totalorder 0, 0
    // Predicated region
    $region30: #{tpu_custom_call.1} parent=1 // pred_check
      %p70 = pneg %p69
    $region31: #{tpu_custom_call.1} parent=1 // pred_check_branch
      %72 = sbr.rel (%p70) target = $region33
    $region32: #{tpu_custom_call.1} parent=1 // pred_region
      %v73 = vld [vmem:[#allocation2] sm:$0xff]
      %v74 = vld [vmem:[#allocation2 + $0x8] sm:$0xff]
      %v75 = vld [vmem:[#allocation2 + $0x10] sm:$0xff]
      %v76 = vld [vmem:[#allocation2 + $0x18] sm:$0xff]
      %v77 = vld [vmem:[#allocation2 + $0x20] sm:$0xff]
      %v78 = vld [vmem:[#allocation2 + $0x28] sm:$0xff]
      %v79 = vld [vmem:[#allocation2 + $0x30] sm:$0xff]
      %v80 = vld [vmem:[#allocation2 + $0x38] sm:$0xff]
      %v81 = vld [vmem:[#allocation2 + $0x40] sm:$0xff]
      %v82 = vld [vmem:[#allocation2 + $0x48] sm:$0xff]
      %v83 = vld [vmem:[#allocation2 + $0x50] sm:$0xff]
      %v84 = vld [vmem:[#allocation2 + $0x58] sm:$0xff]
      %v85 = vld [vmem:[#allocation2 + $0x60] sm:$0xff]
      %v86 = vld [vmem:[#allocation2 + $0x68] sm:$0xff]
      %v87 = vld [vmem:[#allocation2 + $0x70] sm:$0xff]
      %v88 = vld [vmem:[#allocation2 + $0x78] sm:$0xff]
      %v89 = vmul.f32 %v73, %v73
      %v90 = vmul.f32 %v74, %v74
      %v91 = vmul.f32 %v75, %v75
      %v92 = vmul.f32 %v76, %v76
      %v93 = vmul.f32 %v77, %v77
      %v94 = vmul.f32 %v78, %v78
      %v95 = vmul.f32 %v79, %v79
      %v96 = vmul.f32 %v80, %v80
      %v97 = vmul.f32 %v81, %v81
      %v98 = vmul.f32 %v82, %v82
      %v99 = vmul.f32 %v83, %v83
      %v100 = vmul.f32 %v84, %v84
      %v101 = vmul.f32 %v85, %v85
      %v102 = vmul.f32 %v86, %v86
      %v103 = vmul.f32 %v87, %v87
      %v104 = vmul.f32 %v88, %v88
      %105 = vadd.xlane.f32.xlu0 %v89
      %v106 = vpop.xlane.xlu0 %105
      %107 = vadd.xlane.f32.xlu0 %v90
      %v108 = vpop.xlane.xlu0 %107
      %109 = vadd.xlane.f32.xlu0 %v91
      %v110 = vpop.xlane.xlu0 %109
      %111 = vadd.xlane.f32.xlu0 %v92
      %v112 = vpop.xlane.xlu0 %111
      %113 = vadd.xlane.f32.xlu0 %v93
      %v114 = vpop.xlane.xlu0 %113
      %115 = vadd.xlane.f32.xlu0 %v94
      %v116 = vpop.xlane.xlu0 %115
      %117 = vadd.xlane.f32.xlu0 %v95
      %v118 = vpop.xlane.xlu0 %117
      %119 = vadd.xlane.f32.xlu0 %v96
      %v120 = vpop.xlane.xlu0 %119
      %121 = vadd.xlane.f32.xlu0 %v97
      %v122 = vpop.xlane.xlu0 %121
      %123 = vadd.xlane.f32.xlu0 %v98
      %v124 = vpop.xlane.xlu0 %123
      %125 = vadd.xlane.f32.xlu0 %v99
      %v126 = vpop.xlane.xlu0 %125
      %127 = vadd.xlane.f32.xlu0 %v100
      %v128 = vpop.xlane.xlu0 %127
      %129 = vadd.xlane.f32.xlu0 %v101
      %v130 = vpop.xlane.xlu0 %129
      %131 = vadd.xlane.f32.xlu0 %v102
      %v132 = vpop.xlane.xlu0 %131
      %133 = vadd.xlane.f32.xlu0 %v103
      %v134 = vpop.xlane.xlu0 %133
      %135 = vadd.xlane.f32.xlu0 %v104
      %v136 = vpop.xlane.xlu0 %135
      %v137 = vmax.f32 %v106, 1e-24
      %v138 = vmax.f32 %v108, 1e-24
      %v139 = vmax.f32 %v110, 1e-24
      %v140 = vmax.f32 %v112, 1e-24
      %v141 = vmax.f32 %v114, 1e-24
      %v142 = vmax.f32 %v116, 1e-24
      %v143 = vmax.f32 %v118, 1e-24
      %v144 = vmax.f32 %v120, 1e-24
      %v145 = vmax.f32 %v122, 1e-24
      %v146 = vmax.f32 %v124, 1e-24
      %v147 = vmax.f32 %v126, 1e-24
      %v148 = vmax.f32 %v128, 1e-24
      %v149 = vmax.f32 %v130, 1e-24
      %v150 = vmax.f32 %v132, 1e-24
      %v151 = vmax.f32 %v134, 1e-24
      %v152 = vmax.f32 %v136, 1e-24
      %v153 = vrsqrt.pop %v137
      %v154 = vmul.f32 %v153, %v137
      %v155 = vmul.f32 %v154, %v153
      %v156 = vmul.f32 0.5, %v155
      %v157 = vsub.f32 1.5, %v156
      %v158 = vmul.f32 %v153, %v157
      %vm159 = vweird.f32 %v137
      %vm160 = vweird.f32 %v153
      %vm161 = vmor %vm159, %vm160
      %v162 = vsel %vm161, %v153, %v158
      %v163 = vrsqrt.pop %v138
      %v164 = vmul.f32 %v163, %v138
      %v165 = vmul.f32 %v164, %v163
      %v166 = vmul.f32 0.5, %v165
      %v167 = vsub.f32 1.5, %v166
      %v168 = vmul.f32 %v163, %v167
      %vm169 = vweird.f32 %v138
      %vm170 = vweird.f32 %v163
      %vm171 = vmor %vm169, %vm170
      %v172 = vsel %vm171, %v163, %v168
      %v173 = vrsqrt.pop %v139
      %v174 = vmul.f32 %v173, %v139
      %v175 = vmul.f32 %v174, %v173
      %v176 = vmul.f32 0.5, %v175
      %v177 = vsub.f32 1.5, %v176
      %v178 = vmul.f32 %v173, %v177
      %vm179 = vweird.f32 %v139
      %vm180 = vweird.f32 %v173
      %vm181 = vmor %vm179, %vm180
      %v182 = vsel %vm181, %v173, %v178
      %v183 = vrsqrt.pop %v140
      %v184 = vmul.f32 %v183, %v140
      %v185 = vmul.f32 %v184, %v183
      %v186 = vmul.f32 0.5, %v185
      %v187 = vsub.f32 1.5, %v186
      %v188 = vmul.f32 %v183, %v187
      %vm189 = vweird.f32 %v140
      %vm190 = vweird.f32 %v183
      %vm191 = vmor %vm189, %vm190
      %v192 = vsel %vm191, %v183, %v188
      %v193 = vrsqrt.pop %v141
      %v194 = vmul.f32 %v193, %v141
      %v195 = vmul.f32 %v194, %v193
      %v196 = vmul.f32 0.5, %v195
      %v197 = vsub.f32 1.5, %v196
      %v198 = vmul.f32 %v193, %v197
      %vm199 = vweird.f32 %v141
      %vm200 = vweird.f32 %v193
      %vm201 = vmor %vm199, %vm200
      %v202 = vsel %vm201, %v193, %v198
      %v203 = vrsqrt.pop %v142
      %v204 = vmul.f32 %v203, %v142
      %v205 = vmul.f32 %v204, %v203
      %v206 = vmul.f32 0.5, %v205
      %v207 = vsub.f32 1.5, %v206
      %v208 = vmul.f32 %v203, %v207
      %vm209 = vweird.f32 %v142
      %vm210 = vweird.f32 %v203
      %vm211 = vmor %vm209, %vm210
      %v212 = vsel %vm211, %v203, %v208
      %v213 = vrsqrt.pop %v143
      %v214 = vmul.f32 %v213, %v143
      %v215 = vmul.f32 %v214, %v213
      %v216 = vmul.f32 0.5, %v215
      %v217 = vsub.f32 1.5, %v216
      %v218 = vmul.f32 %v213, %v217
      %vm219 = vweird.f32 %v143
      %vm220 = vweird.f32 %v213
      %vm221 = vmor %vm219, %vm220
      %v222 = vsel %vm221, %v213, %v218
      %v223 = vrsqrt.pop %v144
      %v224 = vmul.f32 %v223, %v144
      %v225 = vmul.f32 %v224, %v223
      %v226 = vmul.f32 0.5, %v225
      %v227 = vsub.f32 1.5, %v226
      %v228 = vmul.f32 %v223, %v227
      %vm229 = vweird.f32 %v144
      %vm230 = vweird.f32 %v223
      %vm231 = vmor %vm229, %vm230
      %v232 = vsel %vm231, %v223, %v228
      %v233 = vrsqrt.pop %v145
      %v234 = vmul.f32 %v233, %v145
      %v235 = vmul.f32 %v234, %v233
      %v236 = vmul.f32 0.5, %v235
      %v237 = vsub.f32 1.5, %v236
      %v238 = vmul.f32 %v233, %v237
      %vm239 = vweird.f32 %v145
      %vm240 = vweird.f32 %v233
      %vm241 = vmor %vm239, %vm240
      %v242 = vsel %vm241, %v233, %v238
      %v243 = vrsqrt.pop %v146
      %v244 = vmul.f32 %v243, %v146
      %v245 = vmul.f32 %v244, %v243
      %v246 = vmul.f32 0.5, %v245
      %v247 = vsub.f32 1.5, %v246
      %v248 = vmul.f32 %v243, %v247
      %vm249 = vweird.f32 %v146
      %vm250 = vweird.f32 %v243
      %vm251 = vmor %vm249, %vm250
      %v252 = vsel %vm251, %v243, %v248
      %v253 = vrsqrt.pop %v147
      %v254 = vmul.f32 %v253, %v147
      %v255 = vmul.f32 %v254, %v253
      %v256 = vmul.f32 0.5, %v255
      %v257 = vsub.f32 1.5, %v256
      %v258 = vmul.f32 %v253, %v257
      %vm259 = vweird.f32 %v147
      %vm260 = vweird.f32 %v253
      %vm261 = vmor %vm259, %vm260
      %v262 = vsel %vm261, %v253, %v258
      %v263 = vrsqrt.pop %v148
      %v264 = vmul.f32 %v263, %v148
      %v265 = vmul.f32 %v264, %v263
      %v266 = vmul.f32 0.5, %v265
      %v267 = vsub.f32 1.5, %v266
      %v268 = vmul.f32 %v263, %v267
      %vm269 = vweird.f32 %v148
      %vm270 = vweird.f32 %v263
      %vm271 = vmor %vm269, %vm270
      %v272 = vsel %vm271, %v263, %v268
      %v273 = vrsqrt.pop %v149
      %v274 = vmul.f32 %v273, %v149
      %v275 = vmul.f32 %v274, %v273
      %v276 = vmul.f32 0.5, %v275
      %v277 = vsub.f32 1.5, %v276
      %v278 = vmul.f32 %v273, %v277
      %vm279 = vweird.f32 %v149
      %vm280 = vweird.f32 %v273
      %vm281 = vmor %vm279, %vm280
      %v282 = vsel %vm281, %v273, %v278
      %v283 = vrsqrt.pop %v150
      %v284 = vmul.f32 %v283, %v150
      %v285 = vmul.f32 %v284, %v283
      %v286 = vmul.f32 0.5, %v285
      %v287 = vsub.f32 1.5, %v286
      %v288 = vmul.f32 %v283, %v287
      %vm289 = vweird.f32 %v150
      %vm290 = vweird.f32 %v283
      %vm291 = vmor %vm289, %vm290
      %v292 = vsel %vm291, %v283, %v288
      %v293 = vrsqrt.pop %v151
      %v294 = vmul.f32 %v293, %v151
      %v295 = vmul.f32 %v294, %v293
      %v296 = vmul.f32 0.5, %v295
      %v297 = vsub.f32 1.5, %v296
      %v298 = vmul.f32 %v293, %v297
      %vm299 = vweird.f32 %v151
      %vm300 = vweird.f32 %v293
      %vm301 = vmor %vm299, %vm300
      %v302 = vsel %vm301, %v293, %v298
      %v303 = vrsqrt.pop %v152
      %v304 = vmul.f32 %v303, %v152
      %v305 = vmul.f32 %v304, %v303
      %v306 = vmul.f32 0.5, %v305
      %v307 = vsub.f32 1.5, %v306
      %v308 = vmul.f32 %v303, %v307
      %vm309 = vweird.f32 %v152
      %vm310 = vweird.f32 %v303
      %vm311 = vmor %vm309, %vm310
      %v312 = vsel %vm311, %v303, %v308
      %v313 = vmul.f32 %v73, %v162
      %v314 = vmul.f32 %v74, %v172
      %v315 = vmul.f32 %v75, %v182
      %v316 = vmul.f32 %v76, %v192
      %v317 = vmul.f32 %v77, %v202
      %v318 = vmul.f32 %v78, %v212
      %v319 = vmul.f32 %v79, %v222
      %v320 = vmul.f32 %v80, %v232
      %v321 = vmul.f32 %v81, %v242
      %v322 = vmul.f32 %v82, %v252
      %v323 = vmul.f32 %v83, %v262
      %v324 = vmul.f32 %v84, %v272
      %v325 = vmul.f32 %v85, %v282
      %v326 = vmul.f32 %v86, %v292
      %v327 = vmul.f32 %v87, %v302
      %v328 = vmul.f32 %v88, %v312
      %329 = vst [vmem:[#allocation9] sm:$0xff] %v313
      %330 = vst [vmem:[#allocation9 + $0x8] sm:$0xff] %v314
      %331 = vst [vmem:[#allocation9 + $0x10] sm:$0xff] %v315
      %332 = vst [vmem:[#allocation9 + $0x18] sm:$0xff] %v316
      %333 = vst [vmem:[#allocation9 + $0x20] sm:$0xff] %v317
      %334 = vst [vmem:[#allocation9 + $0x28] sm:$0xff] %v318
      %335 = vst [vmem:[#allocation9 + $0x30] sm:$0xff] %v319
      %336 = vst [vmem:[#allocation9 + $0x38] sm:$0xff] %v320
      %337 = vst [vmem:[#allocation9 + $0x40] sm:$0xff] %v321
      %338 = vst [vmem:[#allocation9 + $0x48] sm:$0xff] %v322
      %339 = vst [vmem:[#allocation9 + $0x50] sm:$0xff] %v323
      %340 = vst [vmem:[#allocation9 + $0x58] sm:$0xff] %v324
      %341 = vst [vmem:[#allocation9 + $0x60] sm:$0xff] %v325
      %342 = vst [vmem:[#allocation9 + $0x68] sm:$0xff] %v326
      %343 = vst [vmem:[#allocation9 + $0x70] sm:$0xff] %v327
      %344 = vst [vmem:[#allocation9 + $0x78] sm:$0xff] %v328
      %v345 = vpack.c.bf16 %v314, %v313
      %v346 = vpack.c.bf16 %v316, %v315
      %v347 = vpack.c.bf16 %v318, %v317
      %v348 = vpack.c.bf16 %v320, %v319
      %v349 = vpack.c.bf16 %v322, %v321
      %v350 = vpack.c.bf16 %v324, %v323
      %v351 = vpack.c.bf16 %v326, %v325
      %v352 = vpack.c.bf16 %v328, %v327
      %v353 = vld [vmem:[#allocation7] sm:$0xf]
      %v354 = vld [vmem:[#allocation7 + $0x4] sm:$0xf]
      %v355 = vld [vmem:[#allocation7 + $0x8] sm:$0xf]
      %v356 = vld [vmem:[#allocation7 + $0xc] sm:$0xf]
      %v357 = vld [vmem:[#allocation7 + $0x10] sm:$0xf]
      %v358 = vld [vmem:[#allocation7 + $0x14] sm:$0xf]
      %v359 = vld [vmem:[#allocation7 + $0x18] sm:$0xf]
      %v360 = vld [vmem:[#allocation7 + $0x1c] sm:$0xf]
      %v361 = vld [vmem:[#allocation7 + $0x20] sm:$0xf]
      %v362 = vld [vmem:[#allocation7 + $0x24] sm:$0xf]
      %v363 = vld [vmem:[#allocation7 + $0x28] sm:$0xf]
      %v364 = vld [vmem:[#allocation7 + $0x2c] sm:$0xf]
      %v365 = vld [vmem:[#allocation7 + $0x30] sm:$0xf]
      %v366 = vld [vmem:[#allocation7 + $0x34] sm:$0xf]
      %v367 = vld [vmem:[#allocation7 + $0x38] sm:$0xf]
      %v368 = vld [vmem:[#allocation7 + $0x3c] sm:$0xf]
      %v385 = vunpack.c.l.b16 %v353
      %v386 = vunpack.c.l.b16 %v354
      %v387 = vunpack.c.l.b16 %v355
      %v388 = vunpack.c.l.b16 %v356
      %v389 = vunpack.c.l.b16 %v357
      %v390 = vunpack.c.l.b16 %v358
      %v391 = vunpack.c.l.b16 %v359
      %v392 = vunpack.c.l.b16 %v360
      %v393 = vunpack.c.l.b16 %v361
      %v394 = vunpack.c.l.b16 %v362
      %v395 = vunpack.c.l.b16 %v363
      %v396 = vunpack.c.l.b16 %v364
      %v397 = vunpack.c.l.b16 %v365
      %v398 = vunpack.c.l.b16 %v366
      %v399 = vunpack.c.l.b16 %v367
      %v400 = vunpack.c.l.b16 %v368
      %v401 = vpack.c.b16 %v386, %v385
      %v402 = vpack.c.b16 %v388, %v387
      %v403 = vpack.c.b16 %v390, %v389
      %v404 = vpack.c.b16 %v392, %v391
      %v405 = vpack.c.b16 %v394, %v393
      %v406 = vpack.c.b16 %v396, %v395
      %v407 = vpack.c.b16 %v398, %v397
      %v408 = vpack.c.b16 %v400, %v399
      %417 = vmatpush.bf16.xpose.msra.mxu0 %v408
      %418 = vmatpush.bf16.xpose.msra.mxu0 %v407
      %419 = vmatpush.bf16.xpose.msra.mxu0 %v406
      %420 = vmatpush.bf16.xpose.msra.mxu0 %v405
      %421 = vmatpush.bf16.xpose.msra.mxu0 %v404
      %422 = vmatpush.bf16.xpose.msra.mxu0 %v403
      %423 = vmatpush.bf16.xpose.msra.mxu0 %v402
      %424 = vmatpush.bf16.xpose.msra.mxu0 %v401
      %425 = vmatmul.bf16.gmra.mxu0 %v345
      %v426 = vpop.f32.mrf.mxu0
      %v427 = vadd.f32 0.0, %v426
      %v428 = vpop.f32.mrf.mxu0
      %v429 = vadd.f32 0.0, %v428
      %430 = vmatmul.bf16.gmra.mxu0 %v346
      %v431 = vpop.f32.mrf.mxu0
      %v432 = vadd.f32 0.0, %v431
      %v433 = vpop.f32.mrf.mxu0
      %v434 = vadd.f32 0.0, %v433
      %435 = vmatmul.bf16.gmra.mxu0 %v347
      %v436 = vpop.f32.mrf.mxu0
      %v437 = vadd.f32 0.0, %v436
      %v438 = vpop.f32.mrf.mxu0
      %v439 = vadd.f32 0.0, %v438
      %440 = vmatmul.bf16.gmra.mxu0 %v348
      %v441 = vpop.f32.mrf.mxu0
      %v442 = vadd.f32 0.0, %v441
      %v443 = vpop.f32.mrf.mxu0
      %v444 = vadd.f32 0.0, %v443
      %445 = vmatmul.bf16.gmra.mxu0 %v349
      %v446 = vpop.f32.mrf.mxu0
      %v447 = vadd.f32 0.0, %v446
      %v448 = vpop.f32.mrf.mxu0
      %v449 = vadd.f32 0.0, %v448
      %450 = vmatmul.bf16.gmra.mxu0 %v350
      %v451 = vpop.f32.mrf.mxu0
      %v452 = vadd.f32 0.0, %v451
      %v453 = vpop.f32.mrf.mxu0
      %v454 = vadd.f32 0.0, %v453
      %455 = vmatmul.bf16.gmra.mxu0 %v351
      %v456 = vpop.f32.mrf.mxu0
      %v457 = vadd.f32 0.0, %v456
      %v458 = vpop.f32.mrf.mxu0
      %v459 = vadd.f32 0.0, %v458
      %460 = vmatmul.bf16.gmra.mxu0 %v352
      %v461 = vpop.f32.mrf.mxu0
      %v462 = vadd.f32 0.0, %v461
      %v463 = vpop.f32.mrf.mxu0
      %v464 = vadd.f32 0.0, %v463
      %465 = vdwg.mxu0
      %v466 = vmul.f32 %v162, %v162
      %v467 = vmul.f32 %v172, %v172
      %v468 = vmul.f32 %v182, %v182
      %v469 = vmul.f32 %v192, %v192
      %v470 = vmul.f32 %v202, %v202
      %v471 = vmul.f32 %v212, %v212
      %v472 = vmul.f32 %v222, %v222
      %v473 = vmul.f32 %v232, %v232
      %v474 = vmul.f32 %v242, %v242
      %v475 = vmul.f32 %v252, %v252
      %v476 = vmul.f32 %v262, %v262
      %v477 = vmul.f32 %v272, %v272
      %v478 = vmul.f32 %v282, %v282
      %v479 = vmul.f32 %v292, %v292
      %v480 = vmul.f32 %v302, %v302
      %v481 = vmul.f32 %v312, %v312
      %v482 = vmul.f32 %v106, %v466
      %v483 = vmul.f32 %v108, %v467
      %v484 = vmul.f32 %v110, %v468
      %v485 = vmul.f32 %v112, %v469
      %v486 = vmul.f32 %v114, %v470
      %v487 = vmul.f32 %v116, %v471
      %v488 = vmul.f32 %v118, %v472
      %v489 = vmul.f32 %v120, %v473
      %v490 = vmul.f32 %v122, %v474
      %v491 = vmul.f32 %v124, %v475
      %v492 = vmul.f32 %v126, %v476
      %v493 = vmul.f32 %v128, %v477
      %v494 = vmul.f32 %v130, %v478
      %v495 = vmul.f32 %v132, %v479
      %v496 = vmul.f32 %v134, %v480
      %v497 = vmul.f32 %v136, %v481
      %v498 = vmul.f32 %v427, 2.0
      %v499 = vmul.f32 %v429, 2.0
      %v500 = vmul.f32 %v432, 2.0
      %v501 = vmul.f32 %v434, 2.0
      %v502 = vmul.f32 %v437, 2.0
      %v503 = vmul.f32 %v439, 2.0
      %v504 = vmul.f32 %v442, 2.0
      %v505 = vmul.f32 %v444, 2.0
      %v506 = vmul.f32 %v447, 2.0
      %v507 = vmul.f32 %v449, 2.0
      %v508 = vmul.f32 %v452, 2.0
      %v509 = vmul.f32 %v454, 2.0
      %v510 = vmul.f32 %v457, 2.0
      %v511 = vmul.f32 %v459, 2.0
      %v512 = vmul.f32 %v462, 2.0
      %v513 = vmul.f32 %v464, 2.0
      %v514 = vsub.f32 %v482, %v498
      %v515 = vsub.f32 %v483, %v499
      %v516 = vsub.f32 %v484, %v500
      %v517 = vsub.f32 %v485, %v501
      %v518 = vsub.f32 %v486, %v502
      %v519 = vsub.f32 %v487, %v503
      %v520 = vsub.f32 %v488, %v504
      %v521 = vsub.f32 %v489, %v505
      %v522 = vsub.f32 %v490, %v506
      %v523 = vsub.f32 %v491, %v507
      %v524 = vsub.f32 %v492, %v508
      %v525 = vsub.f32 %v493, %v509
      %v526 = vsub.f32 %v494, %v510
      %v527 = vsub.f32 %v495, %v511
      %v528 = vsub.f32 %v496, %v512
      %v529 = vsub.f32 %v497, %v513
      %v530 = vld [vmem:[%s3] sm:$0x1]
      %v532 = vperm.slane %v530, 0
      %v534 = vadd.f32 %v514, %v532
      %v535 = vadd.f32 %v515, %v532
      %v536 = vadd.f32 %v516, %v532
      %v537 = vadd.f32 %v517, %v532
      %v538 = vadd.f32 %v518, %v532
      %v539 = vadd.f32 %v519, %v532
      %v540 = vadd.f32 %v520, %v532
      %v541 = vadd.f32 %v521, %v532
      %v542 = vadd.f32 %v522, %v532
      %v543 = vadd.f32 %v523, %v532
      %v544 = vadd.f32 %v524, %v532
      %v545 = vadd.f32 %v525, %v532
      %v546 = vadd.f32 %v526, %v532
      %v547 = vadd.f32 %v527, %v532
      %v548 = vadd.f32 %v528, %v532
      %v549 = vadd.f32 %v529, %v532
      %v550 = vmul.f32 %v534, -0.5
      %v551 = vmul.f32 %v535, -0.5
      %v552 = vmul.f32 %v536, -0.5
      %v553 = vmul.f32 %v537, -0.5
      %v554 = vmul.f32 %v538, -0.5
      %v555 = vmul.f32 %v539, -0.5
      %v556 = vmul.f32 %v540, -0.5
      %v557 = vmul.f32 %v541, -0.5
      %v558 = vmul.f32 %v542, -0.5
      %v559 = vmul.f32 %v543, -0.5
      %v560 = vmul.f32 %v544, -0.5
      %v561 = vmul.f32 %v545, -0.5
      %v562 = vmul.f32 %v546, -0.5
      %v563 = vmul.f32 %v547, -0.5
      %v564 = vmul.f32 %v548, -0.5
      %v565 = vmul.f32 %v549, -0.5
      %566 = vst [vmem:[#allocation8] sm:$0xff] %v550
      %567 = vst [vmem:[#allocation8 + $0x8] sm:$0xff] %v551
      %568 = vst [vmem:[#allocation8 + $0x10] sm:$0xff] %v552
      %569 = vst [vmem:[#allocation8 + $0x18] sm:$0xff] %v553
      %570 = vst [vmem:[#allocation8 + $0x20] sm:$0xff] %v554
      %571 = vst [vmem:[#allocation8 + $0x28] sm:$0xff] %v555
      %572 = vst [vmem:[#allocation8 + $0x30] sm:$0xff] %v556
      %573 = vst [vmem:[#allocation8 + $0x38] sm:$0xff] %v557
      %574 = vst [vmem:[#allocation8 + $0x40] sm:$0xff] %v558
      %575 = vst [vmem:[#allocation8 + $0x48] sm:$0xff] %v559
      %576 = vst [vmem:[#allocation8 + $0x50] sm:$0xff] %v560
      %577 = vst [vmem:[#allocation8 + $0x58] sm:$0xff] %v561
      %578 = vst [vmem:[#allocation8 + $0x60] sm:$0xff] %v562
      %579 = vst [vmem:[#allocation8 + $0x68] sm:$0xff] %v563
      %580 = vst [vmem:[#allocation8 + $0x70] sm:$0xff] %v564
      %581 = vst [vmem:[#allocation8 + $0x78] sm:$0xff] %v565
    $region33: #{tpu_custom_call.1} parent=1 // pred_fallthru
      _
    %v582 = vld [vmem:[#allocation5] sm:$0xff]
    %v583 = vld [vmem:[#allocation5 + $0x8] sm:$0xff]
    %v584 = vld [vmem:[#allocation5 + $0x10] sm:$0xff]
    %v585 = vld [vmem:[#allocation5 + $0x18] sm:$0xff]
    %v586 = vld [vmem:[#allocation5 + $0x20] sm:$0xff]
    %v587 = vld [vmem:[#allocation5 + $0x28] sm:$0xff]
    %v588 = vld [vmem:[#allocation5 + $0x30] sm:$0xff]
    %v589 = vld [vmem:[#allocation5 + $0x38] sm:$0xff]
    %v590 = vld [vmem:[#allocation5 + $0x40] sm:$0xff]
    %v591 = vld [vmem:[#allocation5 + $0x48] sm:$0xff]
    %v592 = vld [vmem:[#allocation5 + $0x50] sm:$0xff]
    %v593 = vld [vmem:[#allocation5 + $0x58] sm:$0xff]
    %v594 = vld [vmem:[#allocation5 + $0x60] sm:$0xff]
    %v595 = vld [vmem:[#allocation5 + $0x68] sm:$0xff]
    %v596 = vld [vmem:[#allocation5 + $0x70] sm:$0xff]
    %v597 = vld [vmem:[#allocation5 + $0x78] sm:$0xff]
    %v598 = vmul.f32 %v582, %v582
    %v599 = vmul.f32 %v583, %v583
    %v600 = vmul.f32 %v584, %v584
    %v601 = vmul.f32 %v585, %v585
    %v602 = vmul.f32 %v586, %v586
    %v603 = vmul.f32 %v587, %v587
    %v604 = vmul.f32 %v588, %v588
    %v605 = vmul.f32 %v589, %v589
    %v606 = vmul.f32 %v590, %v590
    %v607 = vmul.f32 %v591, %v591
    %v608 = vmul.f32 %v592, %v592
    %v609 = vmul.f32 %v593, %v593
    %v610 = vmul.f32 %v594, %v594
    %v611 = vmul.f32 %v595, %v595
    %v612 = vmul.f32 %v596, %v596
    %v613 = vmul.f32 %v597, %v597
    %614 = vadd.xlane.f32.xlu0 %v598
    %v615 = vpop.xlane.xlu0 %614
    %616 = vadd.xlane.f32.xlu0 %v599
    %v617 = vpop.xlane.xlu0 %616
    %618 = vadd.xlane.f32.xlu0 %v600
    %v619 = vpop.xlane.xlu0 %618
    %620 = vadd.xlane.f32.xlu0 %v601
    %v621 = vpop.xlane.xlu0 %620
    %622 = vadd.xlane.f32.xlu0 %v602
    %v623 = vpop.xlane.xlu0 %622
    %624 = vadd.xlane.f32.xlu0 %v603
    %v625 = vpop.xlane.xlu0 %624
    %626 = vadd.xlane.f32.xlu0 %v604
    %v627 = vpop.xlane.xlu0 %626
    %628 = vadd.xlane.f32.xlu0 %v605
    %v629 = vpop.xlane.xlu0 %628
    %630 = vadd.xlane.f32.xlu0 %v606
    %v631 = vpop.xlane.xlu0 %630
    %632 = vadd.xlane.f32.xlu0 %v607
    %v633 = vpop.xlane.xlu0 %632
    %634 = vadd.xlane.f32.xlu0 %v608
    %v635 = vpop.xlane.xlu0 %634
    %636 = vadd.xlane.f32.xlu0 %v609
    %v637 = vpop.xlane.xlu0 %636
    %638 = vadd.xlane.f32.xlu0 %v610
    %v639 = vpop.xlane.xlu0 %638
    %640 = vadd.xlane.f32.xlu0 %v611
    %v641 = vpop.xlane.xlu0 %640
    %642 = vadd.xlane.f32.xlu0 %v612
    %v643 = vpop.xlane.xlu0 %642
    %644 = vadd.xlane.f32.xlu0 %v613
    %v645 = vpop.xlane.xlu0 %644
    %v646 = vmax.f32 %v615, 1e-24
    %v647 = vmax.f32 %v617, 1e-24
    %v648 = vmax.f32 %v619, 1e-24
    %v649 = vmax.f32 %v621, 1e-24
    %v650 = vmax.f32 %v623, 1e-24
    %v651 = vmax.f32 %v625, 1e-24
    %v652 = vmax.f32 %v627, 1e-24
    %v653 = vmax.f32 %v629, 1e-24
    %v654 = vmax.f32 %v631, 1e-24
    %v655 = vmax.f32 %v633, 1e-24
    %v656 = vmax.f32 %v635, 1e-24
    %v657 = vmax.f32 %v637, 1e-24
    %v658 = vmax.f32 %v639, 1e-24
    %v659 = vmax.f32 %v641, 1e-24
    %v660 = vmax.f32 %v643, 1e-24
    %v661 = vmax.f32 %v645, 1e-24
    %v662 = vrsqrt.pop %v646
    %v663 = vmul.f32 %v662, %v646
    %v664 = vmul.f32 %v663, %v662
    %v665 = vmul.f32 0.5, %v664
    %v666 = vsub.f32 1.5, %v665
    %v667 = vmul.f32 %v662, %v666
    %vm668 = vweird.f32 %v646
    %vm669 = vweird.f32 %v662
    %vm670 = vmor %vm668, %vm669
    %v671 = vsel %vm670, %v662, %v667
    %v672 = vrsqrt.pop %v647
    %v673 = vmul.f32 %v672, %v647
    %v674 = vmul.f32 %v673, %v672
    %v675 = vmul.f32 0.5, %v674
    %v676 = vsub.f32 1.5, %v675
    %v677 = vmul.f32 %v672, %v676
    %vm678 = vweird.f32 %v647
    %vm679 = vweird.f32 %v672
    %vm680 = vmor %vm678, %vm679
    %v681 = vsel %vm680, %v672, %v677
    %v682 = vrsqrt.pop %v648
    %v683 = vmul.f32 %v682, %v648
    %v684 = vmul.f32 %v683, %v682
    %v685 = vmul.f32 0.5, %v684
    %v686 = vsub.f32 1.5, %v685
    %v687 = vmul.f32 %v682, %v686
    %vm688 = vweird.f32 %v648
    %vm689 = vweird.f32 %v682
    %vm690 = vmor %vm688, %vm689
    %v691 = vsel %vm690, %v682, %v687
    %v692 = vrsqrt.pop %v649
    %v693 = vmul.f32 %v692, %v649
    %v694 = vmul.f32 %v693, %v692
    %v695 = vmul.f32 0.5, %v694
    %v696 = vsub.f32 1.5, %v695
    %v697 = vmul.f32 %v692, %v696
    %vm698 = vweird.f32 %v649
    %vm699 = vweird.f32 %v692
    %vm700 = vmor %vm698, %vm699
    %v701 = vsel %vm700, %v692, %v697
    %v702 = vrsqrt.pop %v650
    %v703 = vmul.f32 %v702, %v650
    %v704 = vmul.f32 %v703, %v702
    %v705 = vmul.f32 0.5, %v704
    %v706 = vsub.f32 1.5, %v705
    %v707 = vmul.f32 %v702, %v706
    %vm708 = vweird.f32 %v650
    %vm709 = vweird.f32 %v702
    %vm710 = vmor %vm708, %vm709
    %v711 = vsel %vm710, %v702, %v707
    %v712 = vrsqrt.pop %v651
    %v713 = vmul.f32 %v712, %v651
    %v714 = vmul.f32 %v713, %v712
    %v715 = vmul.f32 0.5, %v714
    %v716 = vsub.f32 1.5, %v715
    %v717 = vmul.f32 %v712, %v716
    %vm718 = vweird.f32 %v651
    %vm719 = vweird.f32 %v712
    %vm720 = vmor %vm718, %vm719
    %v721 = vsel %vm720, %v712, %v717
    %v722 = vrsqrt.pop %v652
    %v723 = vmul.f32 %v722, %v652
    %v724 = vmul.f32 %v723, %v722
    %v725 = vmul.f32 0.5, %v724
    %v726 = vsub.f32 1.5, %v725
    %v727 = vmul.f32 %v722, %v726
    %vm728 = vweird.f32 %v652
    %vm729 = vweird.f32 %v722
    %vm730 = vmor %vm728, %vm729
    %v731 = vsel %vm730, %v722, %v727
    %v732 = vrsqrt.pop %v653
    %v733 = vmul.f32 %v732, %v653
    %v734 = vmul.f32 %v733, %v732
    %v735 = vmul.f32 0.5, %v734
    %v736 = vsub.f32 1.5, %v735
    %v737 = vmul.f32 %v732, %v736
    %vm738 = vweird.f32 %v653
    %vm739 = vweird.f32 %v732
    %vm740 = vmor %vm738, %vm739
    %v741 = vsel %vm740, %v732, %v737
    %v742 = vrsqrt.pop %v654
    %v743 = vmul.f32 %v742, %v654
    %v744 = vmul.f32 %v743, %v742
    %v745 = vmul.f32 0.5, %v744
    %v746 = vsub.f32 1.5, %v745
    %v747 = vmul.f32 %v742, %v746
    %vm748 = vweird.f32 %v654
    %vm749 = vweird.f32 %v742
    %vm750 = vmor %vm748, %vm749
    %v751 = vsel %vm750, %v742, %v747
    %v752 = vrsqrt.pop %v655
    %v753 = vmul.f32 %v752, %v655
    %v754 = vmul.f32 %v753, %v752
    %v755 = vmul.f32 0.5, %v754
    %v756 = vsub.f32 1.5, %v755
    %v757 = vmul.f32 %v752, %v756
    %vm758 = vweird.f32 %v655
    %vm759 = vweird.f32 %v752
    %vm760 = vmor %vm758, %vm759
    %v761 = vsel %vm760, %v752, %v757
    %v762 = vrsqrt.pop %v656
    %v763 = vmul.f32 %v762, %v656
    %v764 = vmul.f32 %v763, %v762
    %v765 = vmul.f32 0.5, %v764
    %v766 = vsub.f32 1.5, %v765
    %v767 = vmul.f32 %v762, %v766
    %vm768 = vweird.f32 %v656
    %vm769 = vweird.f32 %v762
    %vm770 = vmor %vm768, %vm769
    %v771 = vsel %vm770, %v762, %v767
    %v772 = vrsqrt.pop %v657
    %v773 = vmul.f32 %v772, %v657
    %v774 = vmul.f32 %v773, %v772
    %v775 = vmul.f32 0.5, %v774
    %v776 = vsub.f32 1.5, %v775
    %v777 = vmul.f32 %v772, %v776
    %vm778 = vweird.f32 %v657
    %vm779 = vweird.f32 %v772
    %vm780 = vmor %vm778, %vm779
    %v781 = vsel %vm780, %v772, %v777
    %v782 = vrsqrt.pop %v658
    %v783 = vmul.f32 %v782, %v658
    %v784 = vmul.f32 %v783, %v782
    %v785 = vmul.f32 0.5, %v784
    %v786 = vsub.f32 1.5, %v785
    %v787 = vmul.f32 %v782, %v786
    %vm788 = vweird.f32 %v658
    %vm789 = vweird.f32 %v782
    %vm790 = vmor %vm788, %vm789
    %v791 = vsel %vm790, %v782, %v787
    %v792 = vrsqrt.pop %v659
    %v793 = vmul.f32 %v792, %v659
    %v794 = vmul.f32 %v793, %v792
    %v795 = vmul.f32 0.5, %v794
    %v796 = vsub.f32 1.5, %v795
    %v797 = vmul.f32 %v792, %v796
    %vm798 = vweird.f32 %v659
    %vm799 = vweird.f32 %v792
    %vm800 = vmor %vm798, %vm799
    %v801 = vsel %vm800, %v792, %v797
    %v802 = vrsqrt.pop %v660
    %v803 = vmul.f32 %v802, %v660
    %v804 = vmul.f32 %v803, %v802
    %v805 = vmul.f32 0.5, %v804
    %v806 = vsub.f32 1.5, %v805
    %v807 = vmul.f32 %v802, %v806
    %vm808 = vweird.f32 %v660
    %vm809 = vweird.f32 %v802
    %vm810 = vmor %vm808, %vm809
    %v811 = vsel %vm810, %v802, %v807
    %v812 = vrsqrt.pop %v661
    %v813 = vmul.f32 %v812, %v661
    %v814 = vmul.f32 %v813, %v812
    %v815 = vmul.f32 0.5, %v814
    %v816 = vsub.f32 1.5, %v815
    %v817 = vmul.f32 %v812, %v816
    %vm818 = vweird.f32 %v661
    %vm819 = vweird.f32 %v812
    %vm820 = vmor %vm818, %vm819
    %v821 = vsel %vm820, %v812, %v817
    %v822 = vmul.f32 %v582, %v671
    %v823 = vmul.f32 %v583, %v681
    %v824 = vmul.f32 %v584, %v691
    %v825 = vmul.f32 %v585, %v701
    %v826 = vmul.f32 %v586, %v711
    %v827 = vmul.f32 %v587, %v721
    %v828 = vmul.f32 %v588, %v731
    %v829 = vmul.f32 %v589, %v741
    %v830 = vmul.f32 %v590, %v751
    %v831 = vmul.f32 %v591, %v761
    %v832 = vmul.f32 %v592, %v771
    %v833 = vmul.f32 %v593, %v781
    %v834 = vmul.f32 %v594, %v791
    %v835 = vmul.f32 %v595, %v801
    %v836 = vmul.f32 %v596, %v811
    %v837 = vmul.f32 %v597, %v821
    %v838 = vld [vmem:[#allocation9] sm:$0xff]
    %v839 = vld [vmem:[#allocation9 + $0x8] sm:$0xff]
    %v840 = vld [vmem:[#allocation9 + $0x10] sm:$0xff]
    %v841 = vld [vmem:[#allocation9 + $0x18] sm:$0xff]
    %v842 = vld [vmem:[#allocation9 + $0x20] sm:$0xff]
    %v843 = vld [vmem:[#allocation9 + $0x28] sm:$0xff]
    %v844 = vld [vmem:[#allocation9 + $0x30] sm:$0xff]
    %v845 = vld [vmem:[#allocation9 + $0x38] sm:$0xff]
    %v846 = vld [vmem:[#allocation9 + $0x40] sm:$0xff]
    %v847 = vld [vmem:[#allocation9 + $0x48] sm:$0xff]
    %v848 = vld [vmem:[#allocation9 + $0x50] sm:$0xff]
    %v849 = vld [vmem:[#allocation9 + $0x58] sm:$0xff]
    %v850 = vld [vmem:[#allocation9 + $0x60] sm:$0xff]
    %v851 = vld [vmem:[#allocation9 + $0x68] sm:$0xff]
    %v852 = vld [vmem:[#allocation9 + $0x70] sm:$0xff]
    %v853 = vld [vmem:[#allocation9 + $0x78] sm:$0xff]
    %v854 = vpack.c.bf16 %v839, %v838
    %v855 = vpack.c.bf16 %v841, %v840
    %v856 = vpack.c.bf16 %v843, %v842
    %v857 = vpack.c.bf16 %v845, %v844
    %v858 = vpack.c.bf16 %v847, %v846
    %v859 = vpack.c.bf16 %v849, %v848
    %v860 = vpack.c.bf16 %v851, %v850
    %v861 = vpack.c.bf16 %v853, %v852
    %v862 = vpack.c.bf16 %v823, %v822
    %v863 = vpack.c.bf16 %v825, %v824
    %v864 = vpack.c.bf16 %v827, %v826
    %v865 = vpack.c.bf16 %v829, %v828
    %v866 = vpack.c.bf16 %v831, %v830
    %v867 = vpack.c.bf16 %v833, %v832
    %v868 = vpack.c.bf16 %v835, %v834
    %v869 = vpack.c.bf16 %v837, %v836
    %870 = vmatpush.bf16.xpose.msra.mxu0 %v869
    %871 = vmatpush.bf16.xpose.msra.mxu0 %v868
    %872 = vmatpush.bf16.xpose.msra.mxu0 %v867
    %873 = vmatpush.bf16.xpose.msra.mxu0 %v866
    %874 = vmatpush.bf16.xpose.msra.mxu0 %v865
    %875 = vmatpush.bf16.xpose.msra.mxu0 %v864
    %876 = vmatpush.bf16.xpose.msra.mxu0 %v863
    %877 = vmatpush.bf16.xpose.msra.mxu0 %v862
    %878 = vmatmul.bf16.gmra.mxu0 %v854
    %v879 = vpop.f32.mrf.mxu0
    %v880 = vadd.f32 0.0, %v879
    %v881 = vpop.f32.mrf.mxu0
    %v882 = vadd.f32 0.0, %v881
    %883 = vmatmul.bf16.gmra.mxu0 %v855
    %v884 = vpop.f32.mrf.mxu0
    %v885 = vadd.f32 0.0, %v884
    %v886 = vpop.f32.mrf.mxu0
    %v887 = vadd.f32 0.0, %v886
    %888 = vmatmul.bf16.gmra.mxu0 %v856
    %v889 = vpop.f32.mrf.mxu0
    %v890 = vadd.f32 0.0, %v889
    %v891 = vpop.f32.mrf.mxu0
    %v892 = vadd.f32 0.0, %v891
    %893 = vmatmul.bf16.gmra.mxu0 %v857
    %v894 = vpop.f32.mrf.mxu0
    %v895 = vadd.f32 0.0, %v894
    %v896 = vpop.f32.mrf.mxu0
    %v897 = vadd.f32 0.0, %v896
    %898 = vmatmul.bf16.gmra.mxu0 %v858
    %v899 = vpop.f32.mrf.mxu0
    %v900 = vadd.f32 0.0, %v899
    %v901 = vpop.f32.mrf.mxu0
    %v902 = vadd.f32 0.0, %v901
    %903 = vmatmul.bf16.gmra.mxu0 %v859
    %v904 = vpop.f32.mrf.mxu0
    %v905 = vadd.f32 0.0, %v904
    %v906 = vpop.f32.mrf.mxu0
    %v907 = vadd.f32 0.0, %v906
    %908 = vmatmul.bf16.gmra.mxu0 %v860
    %v909 = vpop.f32.mrf.mxu0
    %v910 = vadd.f32 0.0, %v909
    %v911 = vpop.f32.mrf.mxu0
    %v912 = vadd.f32 0.0, %v911
    %913 = vmatmul.bf16.gmra.mxu0 %v861
    %v914 = vpop.f32.mrf.mxu0
    %v915 = vadd.f32 0.0, %v914
    %v916 = vpop.f32.mrf.mxu0
    %v917 = vadd.f32 0.0, %v916
    %918 = vdwg.mxu0
    %919 = vst [vmem:[#allocation11] sm:$0xff] %v880
    %920 = vst [vmem:[#allocation11 + $0x8] sm:$0xff] %v882
    %921 = vst [vmem:[#allocation11 + $0x10] sm:$0xff] %v885
    %922 = vst [vmem:[#allocation11 + $0x18] sm:$0xff] %v887
    %923 = vst [vmem:[#allocation11 + $0x20] sm:$0xff] %v890
    %924 = vst [vmem:[#allocation11 + $0x28] sm:$0xff] %v892
    %925 = vst [vmem:[#allocation11 + $0x30] sm:$0xff] %v895
    %926 = vst [vmem:[#allocation11 + $0x38] sm:$0xff] %v897
    %927 = vst [vmem:[#allocation11 + $0x40] sm:$0xff] %v900
    %928 = vst [vmem:[#allocation11 + $0x48] sm:$0xff] %v902
    %929 = vst [vmem:[#allocation11 + $0x50] sm:$0xff] %v905
    %930 = vst [vmem:[#allocation11 + $0x58] sm:$0xff] %v907
    %931 = vst [vmem:[#allocation11 + $0x60] sm:$0xff] %v910
    %932 = vst [vmem:[#allocation11 + $0x68] sm:$0xff] %v912
    %933 = vst [vmem:[#allocation11 + $0x70] sm:$0xff] %v915
    %934 = vst [vmem:[#allocation11 + $0x78] sm:$0xff] %v917
    // Predicated region
    $region34: #{tpu_custom_call.1} parent=1 // pred_check
      _
    $region35: #{tpu_custom_call.1} parent=1 // pred_check_branch
      %936 = sbr.rel (0) target = $region37
    $region36: #{tpu_custom_call.1} parent=1 // pred_region
      %938 = vsyncadd [#allocation4], 0
      %s939 = sshll.u32 [#allocation8], 4
      %s940 = int_to_ptr.vmem [resolvable:$true] %s939
      %s941 = sshll.u32 %s4, 4
      %s942 = int_to_ptr.hbm [resolvable:$true] %s941
      %947 = dma.vmem_to_hbm [thread:$0]  %s940, 2048, %s942, [#allocation4], 128, 128, 8
    $region37: #{tpu_custom_call.1} parent=1 // pred_fallthru
      _
    // Predicated region
    $region38: #{tpu_custom_call.1} parent=1 // pred_check
      _
    $region39: #{tpu_custom_call.1} parent=1 // pred_check_branch
      %949 = sbr.rel (0) target = $region41
    $region40: #{tpu_custom_call.1} parent=1 // pred_region
      %951 = vsyncadd [#allocation10], 0
      %s952 = sshll.u32 [#allocation9], 4
      %s953 = int_to_ptr.vmem [resolvable:$true] %s952
      %s954 = sshll.u32 %s5, 4
      %s955 = int_to_ptr.hbm [resolvable:$true] %s954
      %960 = dma.vmem_to_hbm [thread:$0]  %s953, 2048, %s955, [#allocation10], 128, 128, 8
    $region41: #{tpu_custom_call.1} parent=1 // pred_fallthru
      _
    // Predicated region
    $region42: #{tpu_custom_call.1} parent=1 // pred_check
      _
    $region43: #{tpu_custom_call.1} parent=1 // pred_check_branch
      %962 = sbr.rel (0) target = $region45
    $region44: #{tpu_custom_call.1} parent=1 // pred_region
      %964 = vsyncadd [#allocation10], 0
      %s965 = sshll.u32 [#allocation11], 4
      %s966 = int_to_ptr.vmem [resolvable:$true] %s965
      %s967 = sshll.u32 %s6, 4
      %s968 = int_to_ptr.hbm [resolvable:$true] %s967
      %973 = dma.vmem_to_hbm [thread:$0]  %s966, 2048, %s968, [#allocation10], 128, 128, 8
    $region45: #{tpu_custom_call.1} parent=1 // pred_fallthru
      _
    // Predicated region
    $region46: #{tpu_custom_call.1} parent=1 // pred_check
      _
    $region47: #{tpu_custom_call.1} parent=1 // pred_check_branch
      %975 = sbr.rel (0) target = $region49
    $region48: #{tpu_custom_call.1} parent=1 // pred_region
      %977 = dma.done [#allocation4], 2048
    $region49: #{tpu_custom_call.1} parent=1 // pred_fallthru
      _
    // Predicated region
    $region50: #{tpu_custom_call.1} parent=1 // pred_check
      _
    $region51: #{tpu_custom_call.1} parent=1 // pred_check_branch
      %979 = sbr.rel (0) target = $region53
    $region52: #{tpu_custom_call.1} parent=1 // pred_region
      %981 = dma.done [#allocation10], 2048
    $region53: #{tpu_custom_call.1} parent=1 // pred_fallthru
      _
    // Predicated region
    $region54: #{tpu_custom_call.1} parent=1 // pred_check
      _
    $region55: #{tpu_custom_call.1} parent=1 // pred_check_branch
      %983 = sbr.rel (0) target = $region57
    $region56: #{tpu_custom_call.1} parent=1 // pred_region
      %985 = dma.done [#allocation10], 2048
    $region57: #{tpu_custom_call.1} parent=1 // pred_fallthru
      _
    %986 = vsyncpa [#allocation3], 1
    %987 = vsyncpa [#allocation6], 1
    %988 = vsyncpa [#allocation4], 1
    %989 = vsyncpa [#allocation10], 1

</llo_original>
